<compile_context>
chip_gen: v7x
topology: tpu7x:2x2x1
jax: 0.10.0
libtpu: 0.0.40
codegen_flags: <defaults>
</compile_context>

<pallas_src>
import functools

import jax
import jax.numpy as jnp
from jax.experimental import pallas as pl
from jax.experimental.pallas import tpu as pltpu

ALPHA = 0.2            # LeakyReLU negative slope
NEG_BIG = -9e15        # matches -9000000000000000.0 in the reference


def _op_attn_kernel(n_nodes, h_ref, mask_ref, w_ref, a_ref, out_ref):
    # h_ref   : (R, Nin)   R = block_b * n_nodes (block_b whole batches, row-major)
    # mask_ref: (R, 3)
    # w_ref   : (Nin, D)
    # a_ref   : (2, D)
    # out_ref : (R, D)
    N = n_nodes
    R = h_ref.shape[0]

    # ---- node projection: one lane-dense 2-D MXU matmul over the folded rows ----
    Wh = jnp.dot(h_ref[...], w_ref[...], preferred_element_type=jnp.float32)    # (R, D)

    # ---- attention-coefficient mat-vecs on the VPU/XLU (no lane-1 MXU outputs) ----
    a = a_ref[...]
    a1 = a[0:1, :]                                                # (1, D)
    a2 = a[1:2, :]                                                # (1, D)
    s1 = jnp.sum(Wh * a1, axis=-1, keepdims=True)                 # (R, 1)
    s2 = jnp.sum(Wh * a2, axis=-1, keepdims=True)                 # (R, 1)

    # ---- per-batch circular shifts over the N nodes of each folded batch ----
    row = jax.lax.broadcasted_iota(jnp.int32, (R, 1), 0)
    is_first = (row % N) == 0             # first node of its batch
    is_last = (row % N) == (N - 1)        # last node of its batch

    def roll_prev(x):  # value at node i-1 (circular inside each batch)
        if N == 1:
            return x
        return jnp.where(is_first, jnp.roll(x, -(N - 1), axis=0),
                         jnp.roll(x, 1, axis=0))

    def roll_next(x):  # value at node i+1 (circular inside each batch)
        if N == 1:
            return x
        return jnp.where(is_last, jnp.roll(x, N - 1, axis=0),
                         jnp.roll(x, -1, axis=0))

    def leaky(x):
        return jnp.where(x > 0, x, ALPHA * x)

    # Narrow (R, 1) work first: attention logits, mask, softmax.
    e_prev = leaky(s1 + roll_prev(s2))                            # (R, 1)
    e_self = leaky(s1 + s2)                                       # (R, 1)
    e_next = leaky(s1 + roll_next(s2))                            # (R, 1)

    # ---- masking: op_mask > 0 marks a NON-existent neighbour (torch.where(cond, -9e15, e)) ----
    mask = mask_ref[...]                                          # (R, 3)
    neg = jnp.float32(NEG_BIG)
    e_prev = jnp.where(mask[:, 0:1] > 0, neg, e_prev)
    e_self = jnp.where(mask[:, 1:2] > 0, neg, e_self)
    e_next = jnp.where(mask[:, 2:3] > 0, neg, e_next)

    # ---- numerically stable 3-way softmax; reciprocal routed to the EUP ----
    m = jnp.maximum(jnp.maximum(e_prev, e_self), e_next)
    p_prev = jnp.exp(e_prev - m)
    p_self = jnp.exp(e_self - m)
    p_next = jnp.exp(e_next - m)
    inv = pl.reciprocal(p_prev + p_self + p_next, approx=True)
    c_prev = p_prev * inv
    c_self = p_self * inv
    c_next = p_next * inv

    # TODO(synk): attention dropout is identity in eval mode; training-mode dropout
    # (pltpu.prng_random_bits-based masking) is not implemented here.

    # ---- aggregation: weighted sum of {prev, self, next} projected features ----
    # Wide (R, D) rolls only here, consumed immediately (keeps vreg pressure low).
    out = c_self * Wh
    out = out + c_prev * roll_prev(Wh)
    out = out + c_next * roll_next(Wh)                            # (R, D)
    out_ref[...] = out.astype(out_ref.dtype)


def _pick_block_b(batch, n_nodes, target_rows=1024):
    """Largest divisor of `batch` whose folded row count respects the sublane tiling.

    A partial block (block_b < batch) must have block_b * n_nodes divisible by 8 to satisfy
    the (8, 128) block-shape rule; a full block (block_b == batch) is always legal.
    """
    limit = max(1, min(batch, target_rows // max(n_nodes, 1)))
    best = None
    for bb in range(1, batch + 1):
        if batch % bb != 0:
            continue
        ok_shape = (bb == batch) or ((bb * n_nodes) % 8 == 0)
        if not ok_shape:
            continue
        if bb <= limit or best is None:
            best = bb
        if bb > limit and best is not None:
            break
    return best if best is not None else batch


def single_op_attn_block(h, op_mask, W, a, *, block_b=None):
    """Pallas TPU forward for SingleOpAttnBlock (eval mode).

    h:       [B, N, input_dim]
    op_mask: [B, N, 3]   (>0 marks a NON-existent predecessor/self/successor slot)
    W:       [input_dim, output_dim]
    a:       [2*output_dim, 1]
    returns: [B, N, output_dim] float32
    """
    B, N, Nin = h.shape
    D = W.shape[-1]
    assert W.shape == (Nin, D)
    assert a.shape == (2 * D, 1)
    assert op_mask.shape == (B, N, 3)

    if block_b is None:
        block_b = _pick_block_b(B, N)
    assert B % block_b == 0
    rows = block_b * N
    grid = (B // block_b,)

    # Flatten to lane-dense 2-D slabs in the wrapper (free XLA reshapes on HBM).
    h2 = h.astype(jnp.float32).reshape(B * N, Nin)
    mask2 = op_mask.astype(jnp.float32).reshape(B * N, 3)
    w32 = W.astype(jnp.float32)
    a2 = a.astype(jnp.float32).reshape(2, D)      # row layout: D stays in the lane dim

    out2 = pl.pallas_call(
        functools.partial(_op_attn_kernel, N),
        out_shape=jax.ShapeDtypeStruct((B * N, D), jnp.float32),
        grid_spec=pltpu.PrefetchScalarGridSpec(
            num_scalar_prefetch=0,
            grid=grid,
            in_specs=[
                pl.BlockSpec((rows, Nin), lambda i: (i, 0)),
                pl.BlockSpec((rows, 3), lambda i: (i, 0)),
                pl.BlockSpec((Nin, D), lambda i: (0, 0)),   # resident across grid steps
                pl.BlockSpec((2, D), lambda i: (0, 0)),      # resident across grid steps
            ],
            out_specs=pl.BlockSpec((rows, D), lambda i: (i, 0)),
        ),
        compiler_params=pltpu.CompilerParams(
            dimension_semantics=("parallel",)),
    )(h2, mask2, w32, a2)
    return out2.reshape(B, N, D)


def _xavier_uniform(key, shape, gain):
    fan_in, fan_out = shape[0], shape[1]
    bound = gain * jnp.sqrt(6.0 / (fan_in + fan_out))
    return jax.random.uniform(key, shape, jnp.float32, -bound, bound)


def _reference(h, op_mask, W, a, D):
    """Pure-JAX mirror of the PyTorch forward (eval mode)."""
    Wh = jnp.matmul(h, W)                                                   # (B, N, D)
    Wh_concat = jnp.stack(
        [jnp.roll(Wh, 1, axis=1), Wh, jnp.roll(Wh, -1, axis=1)], axis=-2)   # (B, N, 3, D)
    Wh1 = jnp.matmul(Wh, a[:D, :])                                          # (B, N, 1)
    Wh2 = jnp.matmul(Wh, a[D:, :])                                          # (B, N, 1)
    Wh2_concat = jnp.stack(
        [jnp.roll(Wh2, 1, axis=1), Wh2, jnp.roll(Wh2, -1, axis=1)], axis=-1)  # (B, N, 1, 3)
    e = Wh1[..., None] + Wh2_concat                                         # (B, N, 1, 3)
    e = jnp.where(e > 0, e, ALPHA * e)
    attn = jnp.where(op_mask[:, :, None, :] > 0, NEG_BIG, e)
    attn = jax.nn.softmax(attn, axis=-1)
    return jnp.matmul(attn, Wh_concat)[..., 0, :]                           # (B, N, D)


if __name__ == "__main__":
    B, N = 2, 8
    input_dim, output_dim = 16, 32
    gain = 1.414

    key = jax.random.PRNGKey(0)
    k_h, k_m, k_w, k_a = jax.random.split(key, 4)

    h = jax.random.normal(k_h, (B, N, input_dim), jnp.float32)
    # op_mask > 0 marks a NON-existent predecessor/self/successor slot (~30% masked out)
    op_mask = (jax.random.uniform(k_m, (B, N, 3)) > 0.7).astype(jnp.float32)

    W = _xavier_uniform(k_w, (input_dim, output_dim), gain)
    a = _xavier_uniform(k_a, (2 * output_dim, 1), gain)

    out = single_op_attn_block(h, op_mask, W, a)
    out = jax.block_until_ready(out)

    ref = _reference(h, op_mask, W, a, output_dim)
    assert out.shape == (B, N, output_dim)
    assert jnp.allclose(out, ref, atol=5e-3, rtol=5e-3), (
        "mismatch vs reference: max abs diff = %g"
        % float(jnp.max(jnp.abs(out - ref))))

    print("KERNEL_OK")
</pallas_src>

<mosaic_0001>
module attributes {stable_mosaic.version = 11 : i64} {
  func.func @_op_attn_kernel(%arg0: i32, %arg1: memref<16x16xf32, #tpu.memory_space<vmem>>, %arg2: memref<16x3xf32, #tpu.memory_space<vmem>>, %arg3: memref<16x32xf32, #tpu.memory_space<vmem>>, %arg4: memref<2x32xf32, #tpu.memory_space<vmem>>, %arg5: memref<16x32xf32, #tpu.memory_space<vmem>>) attributes {dimension_semantics = [#tpu.dimension_semantics<parallel>], iteration_bounds = array<i64: 1>, scalar_prefetch = 0 : i64, scratch_operands = 0 : i64, tpu.core_type = #tpu.core_type<tc>, window_params = [{transform_indices = @transform_0, window_bounds = array<i64: 16, 16>}, {transform_indices = @transform_1, window_bounds = array<i64: 16, 3>}, {pipeline_mode = #tpu.pipeline_mode<synchronous>, transform_indices = @transform_2, window_bounds = array<i64: 16, 32>}, {pipeline_mode = #tpu.pipeline_mode<synchronous>, transform_indices = @transform_3, window_bounds = array<i64: 2, 32>}, {transform_indices = @transform_4, window_bounds = array<i64: 16, 32>}]} {
    %c0 = arith.constant 0 : index
    %c0_0 = arith.constant 0 : index
    %0 = vector.load %arg1[%c0, %c0_0] : memref<16x16xf32, #tpu.memory_space<vmem>>, vector<16x16xf32>
    %c0_1 = arith.constant 0 : index
    %c0_2 = arith.constant 0 : index
    %1 = vector.load %arg3[%c0_1, %c0_2] : memref<16x32xf32, #tpu.memory_space<vmem>>, vector<16x32xf32>
    %cst = arith.constant dense<0.000000e+00> : vector<16x32xf32>
    %2 = tpu.matmul %0, %1, %cst {dimension_numbers = #tpu.dot_dimension_numbers<[1], [0], [0], [1], [0, 0, 1, 1], [], []>} : vector<16x16xf32>, vector<16x32xf32>, vector<16x32xf32> -> vector<16x32xf32>
    %c0_3 = arith.constant 0 : index
    %c0_4 = arith.constant 0 : index
    %3 = vector.load %arg4[%c0_3, %c0_4] : memref<2x32xf32, #tpu.memory_space<vmem>>, vector<2x32xf32>
    %4 = vector.extract_strided_slice %3 {offsets = [0, 0], sizes = [1, 32], strides = [1, 1]} : vector<2x32xf32> to vector<1x32xf32>
    %5 = vector.extract_strided_slice %3 {offsets = [1, 0], sizes = [1, 32], strides = [1, 1]} : vector<2x32xf32> to vector<1x32xf32>
    %6 = vector.broadcast %4 : vector<1x32xf32> to vector<16x32xf32>
    %7 = arith.mulf %2, %6 : vector<16x32xf32>
    %cst_5 = arith.constant dense<0.000000e+00> : vector<16xf32>
    %8 = vector.multi_reduction <add>, %7, %cst_5 [1] : vector<16x32xf32> to vector<16xf32>
    %9 = vector.shape_cast %8 : vector<16xf32> to vector<16x1xf32>
    %10 = vector.broadcast %5 : vector<1x32xf32> to vector<16x32xf32>
    %11 = arith.mulf %2, %10 : vector<16x32xf32>
    %cst_6 = arith.constant dense<0.000000e+00> : vector<16xf32>
    %12 = vector.multi_reduction <add>, %11, %cst_6 [1] : vector<16x32xf32> to vector<16xf32>
    %13 = vector.shape_cast %12 : vector<16xf32> to vector<16x1xf32>
    %14 = tpu.iota {dimensions = array<i32: 0>} : vector<16x1xi32>
    %c8_i32 = arith.constant 8 : i32
    %c0_i32 = arith.constant 0 : i32
    %15 = arith.cmpi eq, %c8_i32, %c0_i32 : i32
    %c1_i32 = arith.constant 1 : i32
    %16 = arith.select %15, %c1_i32, %c8_i32 : i32
    %17 = vector.broadcast %16 : i32 to vector<16x1xi32>
    %18 = arith.remsi %14, %17 : vector<16x1xi32>
    %c0_i32_7 = arith.constant 0 : i32
    %19 = vector.broadcast %c0_i32_7 : i32 to vector<16x1xi32>
    %20 = arith.cmpi ne, %18, %19 : vector<16x1xi32>
    %c0_i32_8 = arith.constant 0 : i32
    %21 = vector.broadcast %c0_i32_8 : i32 to vector<16x1xi32>
    %22 = arith.cmpi slt, %18, %21 : vector<16x1xi32>
    %c0_i32_9 = arith.constant 0 : i32
    %23 = arith.cmpi slt, %16, %c0_i32_9 : i32
    %24 = vector.broadcast %23 : i1 to vector<16x1xi1>
    %25 = vector.broadcast %24 : vector<16x1xi1> to vector<16x1xi1>
    %26 = arith.xori %22, %25 : vector<16x1xi1>
    %27 = arith.andi %26, %20 : vector<16x1xi1>
    %28 = vector.broadcast %16 : i32 to vector<16x1xi32>
    %29 = arith.addi %18, %28 : vector<16x1xi32>
    %30 = arith.select %27, %29, %18 : vector<16x1xi1>, vector<16x1xi32>
    %c0_i32_10 = arith.constant 0 : i32
    %31 = vector.broadcast %c0_i32_10 : i32 to vector<16x1xi32>
    %32 = arith.cmpi eq, %30, %31 : vector<16x1xi32>
    %c8_i32_11 = arith.constant 8 : i32
    %c0_i32_12 = arith.constant 0 : i32
    %33 = arith.cmpi eq, %c8_i32_11, %c0_i32_12 : i32
    %c1_i32_13 = arith.constant 1 : i32
    %34 = arith.select %33, %c1_i32_13, %c8_i32_11 : i32
    %35 = vector.broadcast %34 : i32 to vector<16x1xi32>
    %36 = arith.remsi %14, %35 : vector<16x1xi32>
    %c0_i32_14 = arith.constant 0 : i32
    %37 = vector.broadcast %c0_i32_14 : i32 to vector<16x1xi32>
    %38 = arith.cmpi ne, %36, %37 : vector<16x1xi32>
    %c0_i32_15 = arith.constant 0 : i32
    %39 = vector.broadcast %c0_i32_15 : i32 to vector<16x1xi32>
    %40 = arith.cmpi slt, %36, %39 : vector<16x1xi32>
    %c0_i32_16 = arith.constant 0 : i32
    %41 = arith.cmpi slt, %34, %c0_i32_16 : i32
    %42 = vector.broadcast %41 : i1 to vector<16x1xi1>
    %43 = vector.broadcast %42 : vector<16x1xi1> to vector<16x1xi1>
    %44 = arith.xori %40, %43 : vector<16x1xi1>
    %45 = arith.andi %44, %38 : vector<16x1xi1>
    %46 = vector.broadcast %34 : i32 to vector<16x1xi32>
    %47 = arith.addi %36, %46 : vector<16x1xi32>
    %48 = arith.select %45, %47, %36 : vector<16x1xi1>, vector<16x1xi32>
    %c7_i32 = arith.constant 7 : i32
    %49 = vector.broadcast %c7_i32 : i32 to vector<16x1xi32>
    %50 = arith.cmpi eq, %48, %49 : vector<16x1xi32>
    %51 = vector.extract_strided_slice %13 {offsets = [7, 0], sizes = [9, 1], strides = [1, 1]} : vector<16x1xf32> to vector<9x1xf32>
    %52 = vector.extract_strided_slice %13 {offsets = [0, 0], sizes = [7, 1], strides = [1, 1]} : vector<16x1xf32> to vector<7x1xf32>
    %53 = tpu.concatenate %51, %52 in 0 : vector<9x1xf32>, vector<7x1xf32> -> vector<16x1xf32>
    %54 = vector.extract_strided_slice %13 {offsets = [15, 0], sizes = [1, 1], strides = [1, 1]} : vector<16x1xf32> to vector<1x1xf32>
    %55 = vector.extract_strided_slice %13 {offsets = [0, 0], sizes = [15, 1], strides = [1, 1]} : vector<16x1xf32> to vector<15x1xf32>
    %56 = tpu.concatenate %54, %55 in 0 : vector<1x1xf32>, vector<15x1xf32> -> vector<16x1xf32>
    %57 = arith.select %32, %53, %56 : vector<16x1xi1>, vector<16x1xf32>
    %58 = arith.addf %9, %57 : vector<16x1xf32>
    %cst_17 = arith.constant 0.000000e+00 : f32
    %59 = vector.broadcast %cst_17 : f32 to vector<16x1xf32>
    %60 = arith.cmpf ogt, %58, %59 : vector<16x1xf32>
    %cst_18 = arith.constant 2.000000e-01 : f32
    %61 = vector.broadcast %cst_18 : f32 to vector<16x1xf32>
    %62 = arith.mulf %61, %58 : vector<16x1xf32>
    %63 = arith.select %60, %58, %62 : vector<16x1xi1>, vector<16x1xf32>
    %64 = arith.addf %9, %13 : vector<16x1xf32>
    %cst_19 = arith.constant 0.000000e+00 : f32
    %65 = vector.broadcast %cst_19 : f32 to vector<16x1xf32>
    %66 = arith.cmpf ogt, %64, %65 : vector<16x1xf32>
    %cst_20 = arith.constant 2.000000e-01 : f32
    %67 = vector.broadcast %cst_20 : f32 to vector<16x1xf32>
    %68 = arith.mulf %67, %64 : vector<16x1xf32>
    %69 = arith.select %66, %64, %68 : vector<16x1xi1>, vector<16x1xf32>
    %70 = vector.extract_strided_slice %13 {offsets = [9, 0], sizes = [7, 1], strides = [1, 1]} : vector<16x1xf32> to vector<7x1xf32>
    %71 = vector.extract_strided_slice %13 {offsets = [0, 0], sizes = [9, 1], strides = [1, 1]} : vector<16x1xf32> to vector<9x1xf32>
    %72 = tpu.concatenate %70, %71 in 0 : vector<7x1xf32>, vector<9x1xf32> -> vector<16x1xf32>
    %73 = vector.extract_strided_slice %13 {offsets = [1, 0], sizes = [15, 1], strides = [1, 1]} : vector<16x1xf32> to vector<15x1xf32>
    %74 = vector.extract_strided_slice %13 {offsets = [0, 0], sizes = [1, 1], strides = [1, 1]} : vector<16x1xf32> to vector<1x1xf32>
    %75 = tpu.concatenate %73, %74 in 0 : vector<15x1xf32>, vector<1x1xf32> -> vector<16x1xf32>
    %76 = arith.select %50, %72, %75 : vector<16x1xi1>, vector<16x1xf32>
    %77 = arith.addf %9, %76 : vector<16x1xf32>
    %cst_21 = arith.constant 0.000000e+00 : f32
    %78 = vector.broadcast %cst_21 : f32 to vector<16x1xf32>
    %79 = arith.cmpf ogt, %77, %78 : vector<16x1xf32>
    %cst_22 = arith.constant 2.000000e-01 : f32
    %80 = vector.broadcast %cst_22 : f32 to vector<16x1xf32>
    %81 = arith.mulf %80, %77 : vector<16x1xf32>
    %82 = arith.select %79, %77, %81 : vector<16x1xi1>, vector<16x1xf32>
    %c0_23 = arith.constant 0 : index
    %c0_24 = arith.constant 0 : index
    %83 = vector.load %arg2[%c0_23, %c0_24] : memref<16x3xf32, #tpu.memory_space<vmem>>, vector<16x3xf32>
    %84 = vector.extract_strided_slice %83 {offsets = [0, 0], sizes = [16, 1], strides = [1, 1]} : vector<16x3xf32> to vector<16x1xf32>
    %cst_25 = arith.constant 0.000000e+00 : f32
    %85 = vector.broadcast %cst_25 : f32 to vector<16x1xf32>
    %86 = arith.cmpf ogt, %84, %85 : vector<16x1xf32>
    %cst_26 = arith.constant -9.000000e+15 : f32
    %87 = vector.broadcast %cst_26 : f32 to vector<16x1xf32>
    %88 = arith.select %86, %87, %63 : vector<16x1xi1>, vector<16x1xf32>
    %89 = vector.extract_strided_slice %83 {offsets = [0, 1], sizes = [16, 1], strides = [1, 1]} : vector<16x3xf32> to vector<16x1xf32>
    %cst_27 = arith.constant 0.000000e+00 : f32
    %90 = vector.broadcast %cst_27 : f32 to vector<16x1xf32>
    %91 = arith.cmpf ogt, %89, %90 : vector<16x1xf32>
    %cst_28 = arith.constant -9.000000e+15 : f32
    %92 = vector.broadcast %cst_28 : f32 to vector<16x1xf32>
    %93 = arith.select %91, %92, %69 : vector<16x1xi1>, vector<16x1xf32>
    %94 = vector.extract_strided_slice %83 {offsets = [0, 2], sizes = [16, 1], strides = [1, 1]} : vector<16x3xf32> to vector<16x1xf32>
    %cst_29 = arith.constant 0.000000e+00 : f32
    %95 = vector.broadcast %cst_29 : f32 to vector<16x1xf32>
    %96 = arith.cmpf ogt, %94, %95 : vector<16x1xf32>
    %cst_30 = arith.constant -9.000000e+15 : f32
    %97 = vector.broadcast %cst_30 : f32 to vector<16x1xf32>
    %98 = arith.select %96, %97, %82 : vector<16x1xi1>, vector<16x1xf32>
    %99 = arith.maximumf %88, %93 : vector<16x1xf32>
    %100 = arith.maximumf %99, %98 : vector<16x1xf32>
    %101 = arith.subf %88, %100 : vector<16x1xf32>
    %102 = math.exp %101 : vector<16x1xf32>
    %103 = arith.subf %93, %100 : vector<16x1xf32>
    %104 = math.exp %103 : vector<16x1xf32>
    %105 = arith.subf %98, %100 : vector<16x1xf32>
    %106 = math.exp %105 : vector<16x1xf32>
    %107 = arith.addf %102, %104 : vector<16x1xf32>
    %108 = arith.addf %107, %106 : vector<16x1xf32>
    %109 = tpu.reciprocal %108 {approx = true} : vector<16x1xf32> -> vector<16x1xf32>
    %110 = arith.mulf %102, %109 : vector<16x1xf32>
    %111 = arith.mulf %104, %109 : vector<16x1xf32>
    %112 = arith.mulf %106, %109 : vector<16x1xf32>
    %113 = vector.broadcast %111 : vector<16x1xf32> to vector<16x32xf32>
    %114 = arith.mulf %113, %2 : vector<16x32xf32>
    %115 = vector.extract_strided_slice %2 {offsets = [7, 0], sizes = [9, 32], strides = [1, 1]} : vector<16x32xf32> to vector<9x32xf32>
    %116 = vector.extract_strided_slice %2 {offsets = [0, 0], sizes = [7, 32], strides = [1, 1]} : vector<16x32xf32> to vector<7x32xf32>
    %117 = tpu.concatenate %115, %116 in 0 : vector<9x32xf32>, vector<7x32xf32> -> vector<16x32xf32>
    %118 = vector.extract_strided_slice %2 {offsets = [15, 0], sizes = [1, 32], strides = [1, 1]} : vector<16x32xf32> to vector<1x32xf32>
    %119 = vector.extract_strided_slice %2 {offsets = [0, 0], sizes = [15, 32], strides = [1, 1]} : vector<16x32xf32> to vector<15x32xf32>
    %120 = tpu.concatenate %118, %119 in 0 : vector<1x32xf32>, vector<15x32xf32> -> vector<16x32xf32>
    %121 = vector.shape_cast %32 : vector<16x1xi1> to vector<16x1xi1>
    %122 = vector.broadcast %121 : vector<16x1xi1> to vector<16x32xi1>
    %123 = arith.select %122, %117, %120 : vector<16x32xi1>, vector<16x32xf32>
    %124 = vector.broadcast %110 : vector<16x1xf32> to vector<16x32xf32>
    %125 = arith.mulf %124, %123 : vector<16x32xf32>
    %126 = arith.addf %114, %125 : vector<16x32xf32>
    %127 = vector.extract_strided_slice %2 {offsets = [9, 0], sizes = [7, 32], strides = [1, 1]} : vector<16x32xf32> to vector<7x32xf32>
    %128 = vector.extract_strided_slice %2 {offsets = [0, 0], sizes = [9, 32], strides = [1, 1]} : vector<16x32xf32> to vector<9x32xf32>
    %129 = tpu.concatenate %127, %128 in 0 : vector<7x32xf32>, vector<9x32xf32> -> vector<16x32xf32>
    %130 = vector.extract_strided_slice %2 {offsets = [1, 0], sizes = [15, 32], strides = [1, 1]} : vector<16x32xf32> to vector<15x32xf32>
    %131 = vector.extract_strided_slice %2 {offsets = [0, 0], sizes = [1, 32], strides = [1, 1]} : vector<16x32xf32> to vector<1x32xf32>
    %132 = tpu.concatenate %130, %131 in 0 : vector<15x32xf32>, vector<1x32xf32> -> vector<16x32xf32>
    %133 = vector.shape_cast %50 : vector<16x1xi1> to vector<16x1xi1>
    %134 = vector.broadcast %133 : vector<16x1xi1> to vector<16x32xi1>
    %135 = arith.select %134, %129, %132 : vector<16x32xi1>, vector<16x32xf32>
    %136 = vector.broadcast %112 : vector<16x1xf32> to vector<16x32xf32>
    %137 = arith.mulf %136, %135 : vector<16x32xf32>
    %138 = arith.addf %126, %137 : vector<16x32xf32>
    %c0_31 = arith.constant 0 : index
    %c0_32 = arith.constant 0 : index
    %139 = vector.load %arg5[%c0_31, %c0_32] : memref<16x32xf32, #tpu.memory_space<vmem>>, vector<16x32xf32>
    tpu.vector_store %arg5[%c0_31, %c0_32], %138 {strides = array<i32>} : memref<16x32xf32, #tpu.memory_space<vmem>>, vector<16x32xf32>,
    return
  }
  func.func @transform_0(%arg0: i32) -> (i32, i32) {
    %c0_i32 = arith.constant 0 : i32
    %c0_i32_0 = arith.constant 0 : i32
    return %arg0, %c0_i32 : i32, i32
  }
  func.func @transform_1(%arg0: i32) -> (i32, i32) {
    %c0_i32 = arith.constant 0 : i32
    %c0_i32_0 = arith.constant 0 : i32
    return %arg0, %c0_i32 : i32, i32
  }
  func.func @transform_2(%arg0: i32) -> (i32, i32) {
    %c0_i32 = arith.constant 0 : i32
    %c0_i32_0 = arith.constant 0 : i32
    %c0_i32_1 = arith.constant 0 : i32
    return %c0_i32, %c0_i32_0 : i32, i32
  }
  func.func @transform_3(%arg0: i32) -> (i32, i32) {
    %c0_i32 = arith.constant 0 : i32
    %c0_i32_0 = arith.constant 0 : i32
    %c0_i32_1 = arith.constant 0 : i32
    return %c0_i32, %c0_i32_0 : i32, i32
  }
  func.func @transform_4(%arg0: i32) -> (i32, i32) {
    %c0_i32 = arith.constant 0 : i32
    %c0_i32_0 = arith.constant 0 : i32
    return %arg0, %c0_i32 : i32, i32
  }
}

</mosaic_0001>

<llo_original>
// kernel: tpu_custom_call.1
$region0: #{tpu_custom_call.1}
  #allocation0 [shape = 'u32[]', space=smem, size = 0x4, offset = 0x4, fixed_abs, tag = 'smem constant byte address 0x4 - core index']
  #allocation1 [shape = 'u32[144,128]{1,0:T(1,128)}', space=vmem, size = 0x12000, scoped, tag = 'internal scratch']
  %s0 = inlined_call_operand.vmem [shape: f32[16,16], index: 0, kind: input, shape index: {}]
  %s1 = inlined_call_operand.vmem [shape: f32[16,3], index: 1, kind: input, shape index: {}]
  %s2 = inlined_call_operand.hbm [shape: f32[16,32], index: 2, kind: input, shape index: {}]
  %s3 = inlined_call_operand.vmem [shape: f32[2,32], index: 3, kind: input, shape index: {}]
  %s4 = inlined_call_operand.hbm [shape: f32[16,32], index: 4, kind: output, shape index: {}]
  %s5 = sld [smem:[#allocation0]]
  $region30: #{tpu_custom_call.1} parent=0
    _
  %s7 = ssub.s32 1, %s5
  %s8 = scalar_select 0, %s7, %s5
  $region1: #{tpu_custom_call.1} parent=0
    #allocation2 [shape = 'u8[8192]{0}', space=vmem, size = 0x2000, scoped, tag = 'input window, operand 2, single buffered']
    #allocation3 [shape = 's32[1]{0}', space=sflag, size = 0x4, scoped, tag = 'scoped memory for tpu_custom_call.1']
    #allocation4 [shape = 's32[1]{0}', space=sflag, size = 0x4, scoped, tag = 'scoped memory for tpu_custom_call.1']
    #allocation5 [shape = 'u8[8192]{0}', space=vmem, size = 0x2000, scoped, tag = 'output window, operand 0, single buffered']
    %9 = vsyncpa [#allocation3], 0
    %10 = vsyncpa [#allocation4], 0
    // Predicated region
    $region2: #{tpu_custom_call.1} parent=1 // pred_check
      _
    $region3: #{tpu_custom_call.1} parent=1 // pred_check_branch
      %12 = sbr.rel (0) target = $region5
    $region4: #{tpu_custom_call.1} parent=1 // pred_region
      _
    $region5: #{tpu_custom_call.1} parent=1 // pred_fallthru
      _
    // Predicated region
    $region6: #{tpu_custom_call.1} parent=1 // pred_check
      _
    $region7: #{tpu_custom_call.1} parent=1 // pred_check_branch
      %14 = sbr.rel (0) target = $region9
    $region8: #{tpu_custom_call.1} parent=1 // pred_region
      _
    $region9: #{tpu_custom_call.1} parent=1 // pred_fallthru
      _
    // Predicated region
    $region10: #{tpu_custom_call.1} parent=1 // pred_check
      _
    $region11: #{tpu_custom_call.1} parent=1 // pred_check_branch
      %16 = sbr.rel (0) target = $region13
    $region12: #{tpu_custom_call.1} parent=1 // pred_region
      %s18 = ssub.s32 256, 256
      %19 = vsyncadd [#allocation3], %s18
      %s20 = sshll.u32 [#allocation2], 4
      %s21 = int_to_ptr.vmem [resolvable:$true] %s20
      %26 = dma.hbm_to_vmem [thread:$0]  %s2, 256, %s21, [#allocation3], 128, 128, 8
    $region13: #{tpu_custom_call.1} parent=1 // pred_fallthru
      _
    // Predicated region
    $region14: #{tpu_custom_call.1} parent=1 // pred_check
      _
    $region15: #{tpu_custom_call.1} parent=1 // pred_check_branch
      %28 = sbr.rel (0) target = $region17
    $region16: #{tpu_custom_call.1} parent=1 // pred_region
      _
    $region17: #{tpu_custom_call.1} parent=1 // pred_fallthru
      _
    // Predicated region
    $region18: #{tpu_custom_call.1} parent=1 // pred_check
      _
    $region19: #{tpu_custom_call.1} parent=1 // pred_check_branch
      %30 = sbr.rel (0) target = $region21
    $region20: #{tpu_custom_call.1} parent=1 // pred_region
      %31 = dma.done [#allocation3], 256
    $region21: #{tpu_custom_call.1} parent=1 // pred_fallthru
      _
    %v32 = vld [vmem:[%s0] sm:$0xff]
    %v33 = vld [vmem:[%s0 + $0x8] sm:$0xff]
    %v34 = vld [vmem:[#allocation2] sm:$0xff]
    %v35 = vld [vmem:[#allocation2 + $0x8] sm:$0xff]
    %vm36 = vcmask 130048
    %v38 = vsel %vm36, %v32, 0
    %v41 = vsel %vm36, %v33, 0
    %43 = vmatprep.subr.mxu0 0.0
    %44 = vmatpush1.msra.mxu0 %v34
    %45 = vmatprep.subr.mxu0 0.0
    %46 = vmatpush1.msra.mxu0 %v35
    %47 = vmatprep.subr.mxu0 0.0
    %48 = vmatpush1.msra.mxu0 0.0
    %49 = vmatprep.subr.mxu0 0.0
    %50 = vmatpush1.msra.mxu0 0.0
    %51 = vmatprep.subr.mxu0 0.0
    %52 = vmatpush1.msra.mxu0 0.0
    %53 = vmatprep.subr.mxu0 0.0
    %54 = vmatpush1.msra.mxu0 0.0
    %55 = vmatprep.subr.mxu0 0.0
    %56 = vmatpush1.msra.mxu0 0.0
    %57 = vmatprep.subr.mxu0 0.0
    %58 = vmatpush1.msra.mxu0 0.0
    %59 = vmatprep.subr.mxu0 0.0
    %60 = vmatpush1.msra.mxu0 0.0
    %61 = vmatprep.subr.mxu0 0.0
    %62 = vmatpush1.msra.mxu0 0.0
    %63 = vmatprep.subr.mxu0 0.0
    %64 = vmatpush1.msra.mxu0 0.0
    %65 = vmatprep.subr.mxu0 0.0
    %66 = vmatpush1.msra.mxu0 0.0
    %67 = vmatprep.subr.mxu0 0.0
    %68 = vmatpush1.msra.mxu0 0.0
    %69 = vmatprep.subr.mxu0 0.0
    %70 = vmatpush1.msra.mxu0 0.0
    %71 = vmatprep.subr.mxu0 0.0
    %72 = vmatpush1.msra.mxu0 0.0
    %73 = vmatprep.subr.mxu0 0.0
    %74 = vmatpush1.msra.mxu0 0.0
    %75 = vmatprep.subr.mxu0 0.0
    %76 = vmatpush1.msra.mxu0 0.0
    %77 = vmatprep.subr.mxu0 0.0
    %78 = vmatpush1.msra.mxu0 0.0
    %79 = vmatprep.subr.mxu0 0.0
    %80 = vmatpush1.msra.mxu0 0.0
    %81 = vmatprep.subr.mxu0 0.0
    %82 = vmatpush1.msra.mxu0 0.0
    %83 = vmatprep.subr.mxu0 0.0
    %84 = vmatpush1.msra.mxu0 0.0
    %85 = vmatprep.subr.mxu0 0.0
    %86 = vmatpush1.msra.mxu0 0.0
    %87 = vmatprep.subr.mxu0 0.0
    %88 = vmatpush1.msra.mxu0 0.0
    %89 = vmatprep.subr.mxu0 0.0
    %90 = vmatpush1.msra.mxu0 0.0
    %91 = vmatprep.subr.mxu0 0.0
    %92 = vmatpush1.msra.mxu0 0.0
    %93 = vmatprep.subr.mxu0 0.0
    %94 = vmatpush1.msra.mxu0 0.0
    %95 = vmatprep.subr.mxu0 0.0
    %96 = vmatpush1.msra.mxu0 0.0
    %97 = vmatprep.subr.mxu0 0.0
    %98 = vmatpush1.msra.mxu0 0.0
    %99 = vmatprep.subr.mxu0 0.0
    %100 = vmatpush1.msra.mxu0 0.0
    %101 = vmatprep.subr.mxu0 0.0
    %102 = vmatpush1.msra.mxu0 0.0
    %103 = vmatprep.subr.mxu0 0.0
    %104 = vmatpush1.msra.mxu0 0.0
    %105 = vmatprep.subr.mxu0 0.0
    %106 = vmatpush1.msra.mxu0 0.0
    %107 = vmatprep.mubr.f32.mxu0 0.0
    %108 = vmatmul.mubr.f32.gmra.mrb[0].mxu0 %v38
    %v109 = vpop.f32.mrb[0].mxu0
    %v110 = vadd.f32 0.0, %v109
    %v111 = vpop.f32.mrb[0].mxu0
    %112 = vmatprep.mubr.f32.mxu0 0.0
    %113 = vmatmul.mubr.f32.gmra.mrb[0].mxu0 %v41
    %v114 = vpop.f32.mrb[0].mxu0
    %v115 = vadd.f32 0.0, %v114
    %v116 = vpop.f32.mrb[0].mxu0
    %117 = vdwg.mxu0
    %v118 = vld [vmem:[%s3] sm:$0x3]
    %v119 = vlaneseq
    %v120 = vshrl.u32 %v119, 7
    %v121 = vsub.s32 0, %v120
    %v122 = vrot.slane %v118, %v121
    %v123 = vmul.f32 %v110, %v122
    %v124 = vmul.f32 %v115, %v122
    %vm125 = vcmask 261120
    %v126 = vsel %vm125, %v123, 0.0
    %127 = vadd.xlane.f32.xlu0 %v126
    %v128 = vpop.xlane.xlu0 %127
    %v129 = vsel %vm125, %v124, 0.0
    %130 = vadd.xlane.f32.xlu0 %v129
    %v131 = vpop.xlane.xlu0 %130
    %v132 = vlaneseq
    %v133 = vshrl.u32 %v132, 7
    %v134 = vsub.s32 1, %v133
    %v135 = vrot.slane %v118, %v134
    %v136 = vmul.f32 %v110, %v135
    %v137 = vmul.f32 %v115, %v135
    %v138 = vsel %vm125, %v136, 0.0
    %139 = vadd.xlane.f32.xlu0 %v138
    %v140 = vpop.xlane.xlu0 %139
    %v141 = vsel %vm125, %v137, 0.0
    %142 = vadd.xlane.f32.xlu0 %v141
    %v143 = vpop.xlane.xlu0 %142
    %v144 = vlaneseq
    %v145 = vshrl.u32 %v144, 7
    %v146 = vadd.s32 %v145, 8
    %vm147 = vcmp.lt.s32.totalorder %v145, 0
    %v148 = vsub.s32 0, %v145
    %v149 = vsel %vm147, %v148, %v145
    %v150 = vshrl.u32 %v149, 3
    %v151 = vand.u32 %v149, 7
    %v152 = vsub.s32 0, %v151
    %v153 = vsel %vm147, %v152, %v151
    %vm154 = vcmp.lt.s32.totalorder %v146, 0
    %v155 = vsub.s32 0, %v146
    %v156 = vsel %vm154, %v155, %v146
    %v157 = vshrl.u32 %v156, 3
    %v158 = vand.u32 %v156, 7
    %v159 = vsub.s32 0, %v158
    %v160 = vsel %vm154, %v159, %v158
    %vm161 = vcmp.ne.s32.totalorder %v153, 0
    %vm162 = vcmp.ne.s32.totalorder %v160, 0
    %vm163 = vcmp.lt.s32.totalorder %v153, 0
    %vm164 = vcmp.lt.s32.totalorder %v160, 0
    %vm165 = vmand %vm163, %vm161
    %vm166 = vmand %vm164, %vm162
    %v167 = vadd.s32 %v153, 8
    %v168 = vadd.s32 %v160, 8
    %v169 = vsel %vm165, %v167, %v153
    %v170 = vsel %vm166, %v168, %v160
    %vm171 = vcmp.eq.s32.totalorder %v169, 0
    %vm172 = vcmp.eq.s32.totalorder %v170, 0
    %vm173 = vcmp.eq.s32.totalorder %v169, 7
    %vm174 = vcmp.eq.s32.totalorder %v170, 7
    %vm177 = vcmask 1040384
    %v178 = vrot.slane %v140, 7
    %v179 = vrot.slane %v143, 7
    %v180 = vsel %vm177, %v178, %v179
    %v184 = vsel %vm177, %v179, %v178
    %v185 = vsel %vm171, %v180, %v184
    %v186 = vsel %vm172, %v184, %v180
    %v187 = vadd.f32 %v128, %v185
    %v188 = vadd.f32 %v131, %v186
    %vm189 = vcmp.gt.f32.partialorder %v187, 0.0
    %vm190 = vcmp.gt.f32.partialorder %v188, 0.0
    %v191 = vmul.f32 %v187, 0.2
    %v192 = vmul.f32 %v188, 0.2
    %v193 = vsel %vm189, %v187, %v191
    %v194 = vsel %vm190, %v188, %v192
    %v195 = vadd.f32 %v128, %v140
    %v196 = vadd.f32 %v131, %v143
    %vm197 = vcmp.gt.f32.partialorder %v195, 0.0
    %vm198 = vcmp.gt.f32.partialorder %v196, 0.0
    %v199 = vmul.f32 %v195, 0.2
    %v200 = vmul.f32 %v196, 0.2
    %v201 = vsel %vm197, %v195, %v199
    %v202 = vsel %vm198, %v196, %v200
    %v203 = vrot.slane %v143, 1
    %vm205 = vcmask 1046528
    %v206 = vrot.slane %v140, 1
    %v207 = vsel %vm205, %v206, %v203
    %v210 = vsel %vm205, %v203, %v206
    %v211 = vsel %vm173, %v210, %v207
    %v212 = vsel %vm174, %v207, %v210
    %v213 = vadd.f32 %v128, %v211
    %v214 = vadd.f32 %v131, %v212
    %vm215 = vcmp.gt.f32.partialorder %v213, 0.0
    %vm216 = vcmp.gt.f32.partialorder %v214, 0.0
    %v217 = vmul.f32 %v213, 0.2
    %v218 = vmul.f32 %v214, 0.2
    %v219 = vsel %vm215, %v213, %v217
    %v220 = vsel %vm216, %v214, %v218
    %v221 = vld [vmem:[%s1] sm:$0xff]
    %v222 = vld [vmem:[%s1 + $0x8] sm:$0xff]
    %vm223 = vcmp.gt.f32.partialorder %v221, 0.0
    %vm224 = vcmp.gt.f32.partialorder %v222, 0.0
    %v225 = vsel %vm223, -9e+15, %v193
    %v226 = vsel %vm224, -9e+15, %v194
    %v227 = vsel %vm223, -9e+15, %v201
    %v228 = vsel %vm224, -9e+15, %v202
    %231 = vrot.lane.b32.xlu0 %v219, 2
    %v232 = vpop.permute.xlu0 %231
    %233 = vrot.lane.b32.xlu0 %v220, 2
    %v234 = vpop.permute.xlu0 %233
    %v237 = vsel %vm223, -9e+15, %v232
    %v238 = vsel %vm224, -9e+15, %v234
    %241 = vrot.lane.b32.xlu0 %v227, 127
    %v242 = vpop.permute.xlu0 %241
    %243 = vrot.lane.b32.xlu0 %v228, 127
    %v244 = vpop.permute.xlu0 %243
    %v247 = vmax.f32 %v225, %v242
    %v248 = vmax.f32 %v226, %v244
    %251 = vrot.lane.b32.xlu0 %v237, 126
    %v252 = vpop.permute.xlu0 %251
    %253 = vrot.lane.b32.xlu0 %v238, 126
    %v254 = vpop.permute.xlu0 %253
    %v257 = vmax.f32 %v247, %v252
    %v258 = vmax.f32 %v248, %v254
    %v259 = vsub.f32 %v225, %v257
    %v260 = vsub.f32 %v226, %v258
    %v261 = vmul.f32 %v259, 1.442695
    %v262 = vpow.pop %v261
    %v263 = vmul.f32 %v260, 1.442695
    %v264 = vpow.pop %v263
    %267 = vrot.lane.b32.xlu0 %v257, 1
    %v268 = vpop.permute.xlu0 %267
    %269 = vrot.lane.b32.xlu0 %v258, 1
    %v270 = vpop.permute.xlu0 %269
    %v273 = vsub.f32 %v227, %v268
    %v274 = vsub.f32 %v228, %v270
    %v275 = vmul.f32 %v273, 1.442695
    %v276 = vpow.pop %v275
    %v277 = vmul.f32 %v274, 1.442695
    %v278 = vpow.pop %v277
    %279 = vrot.lane.b32.xlu0 %v257, 2
    %v280 = vpop.permute.xlu0 %279
    %281 = vrot.lane.b32.xlu0 %v258, 2
    %v282 = vpop.permute.xlu0 %281
    %v285 = vsub.f32 %v237, %v280
    %v286 = vsub.f32 %v238, %v282
    %v287 = vmul.f32 %v285, 1.442695
    %v288 = vpow.pop %v287
    %v289 = vmul.f32 %v286, 1.442695
    %v290 = vpow.pop %v289
    %293 = vrot.lane.b32.xlu0 %v276, 127
    %v294 = vpop.permute.xlu0 %293
    %295 = vrot.lane.b32.xlu0 %v278, 127
    %v296 = vpop.permute.xlu0 %295
    %v299 = vadd.f32 %v262, %v294
    %v300 = vadd.f32 %v264, %v296
    %303 = vrot.lane.b32.xlu0 %v288, 126
    %v304 = vpop.permute.xlu0 %303
    %305 = vrot.lane.b32.xlu0 %v290, 126
    %v306 = vpop.permute.xlu0 %305
    %v309 = vadd.f32 %v299, %v304
    %v310 = vadd.f32 %v300, %v306
    %v311 = vrcp.pop %v309
    %v312 = vrcp.pop %v310
    %v313 = vmul.f32 %v262, %v311
    %v314 = vmul.f32 %v264, %v312
    %317 = vrot.lane.b32.xlu0 %v311, 1
    %v318 = vpop.permute.xlu0 %317
    %319 = vrot.lane.b32.xlu0 %v312, 1
    %v320 = vpop.permute.xlu0 %319
    %v323 = vmul.f32 %v276, %v318
    %v324 = vmul.f32 %v278, %v320
    %325 = vrot.lane.b32.xlu0 %v311, 2
    %v326 = vpop.permute.xlu0 %325
    %327 = vrot.lane.b32.xlu0 %v312, 2
    %v328 = vpop.permute.xlu0 %327
    %v331 = vmul.f32 %v288, %v326
    %v332 = vmul.f32 %v290, %v328
    %334 = vset.pattern.permute.xlu0 1
    %335 = vperm.xlu0 %334, %v323
    %v336 = vpop.permute.xlu0 %335
    %339 = vset.pattern.permute.xlu0 1
    %340 = vperm.xlu0 %339, %v324
    %v341 = vpop.permute.xlu0 %340
    %v343 = vmul.f32 %v336, %v110
    %v344 = vmul.f32 %v341, %v115
    %v347 = vrot.slane %v110, 7
    %v348 = vrot.slane %v115, 7
    %v349 = vsel %vm177, %v347, %v348
    %v353 = vsel %vm177, %v348, %v347
    %v354 = vsel %vm171, 1, 0
    %v355 = vsel %vm172, 1, 0
    %vm356 = vcmp.eq.s32.totalorder %v354, 1
    %vm357 = vcmp.eq.s32.totalorder %v355, 1
    %v358 = vsel %vm356, %v349, %v353
    %v359 = vsel %vm357, %v353, %v349
    %361 = vset.pattern.permute.xlu0 0
    %362 = vperm.xlu0 %361, %v313
    %v363 = vpop.permute.xlu0 %362
    %366 = vset.pattern.permute.xlu0 0
    %367 = vperm.xlu0 %366, %v314
    %v368 = vpop.permute.xlu0 %367
    %v370 = vmul.f32 %v363, %v358
    %v371 = vmul.f32 %v368, %v359
    %v372 = vadd.f32 %v343, %v370
    %v373 = vadd.f32 %v344, %v371
    %v374 = vrot.slane %v115, 1
    %v376 = vrot.slane %v110, 1
    %v377 = vsel %vm205, %v376, %v374
    %v380 = vsel %vm205, %v374, %v376
    %v381 = vsel %vm173, 1, 0
    %v382 = vsel %vm174, 1, 0
    %vm383 = vcmp.eq.s32.totalorder %v381, 1
    %vm384 = vcmp.eq.s32.totalorder %v382, 1
    %v385 = vsel %vm383, %v380, %v377
    %v386 = vsel %vm384, %v377, %v380
    %388 = vset.pattern.permute.xlu0 2
    %389 = vperm.xlu0 %388, %v331
    %v390 = vpop.permute.xlu0 %389
    %393 = vset.pattern.permute.xlu0 2
    %394 = vperm.xlu0 %393, %v332
    %v395 = vpop.permute.xlu0 %394
    %v397 = vmul.f32 %v390, %v385
    %v398 = vmul.f32 %v395, %v386
    %v399 = vadd.f32 %v372, %v397
    %v400 = vadd.f32 %v373, %v398
    %401 = vst.msk [vmem:[#allocation5] sm:$0xff] %vm125, %v399
    %402 = vst.msk [vmem:[#allocation5 + $0x8] sm:$0xff] %vm125, %v400
    // Predicated region
    $region22: #{tpu_custom_call.1} parent=1 // pred_check
      _
    $region23: #{tpu_custom_call.1} parent=1 // pred_check_branch
      %404 = sbr.rel (0) target = $region25
    $region24: #{tpu_custom_call.1} parent=1 // pred_region
      %s406 = ssub.s32 256, 256
      %407 = vsyncadd [#allocation4], %s406
      %s408 = sshll.u32 [#allocation5], 4
      %s409 = int_to_ptr.vmem [resolvable:$true] %s408
      %414 = dma.vmem_to_hbm [thread:$0]  %s409, 256, %s4, [#allocation4], 128, 128, 8
    $region25: #{tpu_custom_call.1} parent=1 // pred_fallthru
      _
    // Predicated region
    $region26: #{tpu_custom_call.1} parent=1 // pred_check
      _
    $region27: #{tpu_custom_call.1} parent=1 // pred_check_branch
      %416 = sbr.rel (0) target = $region29
    $region28: #{tpu_custom_call.1} parent=1 // pred_region
      %417 = dma.done [#allocation4], 256
    $region29: #{tpu_custom_call.1} parent=1 // pred_fallthru
      _
    %418 = vsyncpa [#allocation3], 1
    %419 = vsyncpa [#allocation4], 1

</llo_original>
